<compile_context>
chip_gen: v7x
topology: tpu7x:2x2x1
jax: 0.10.0
libtpu: 0.0.40
codegen_flags: <defaults>
</compile_context>

<pallas_src>
import functools

import jax
import jax.numpy as jnp
from jax.experimental import pallas as pl
from jax.experimental.pallas import tpu as pltpu

EPS = 1e-6


def _round_up(x, m):
    return (x + m - 1) // m * m


def _sublayer_connection_kernel(x_ref, mask_ref, w_ref, b_ref, o_ref,
                                ln_ref, xres_ref, acc_ref,
                                *, valid_feats, tk, tn, num_k, num_n):
    n = pl.program_id(1)
    k = pl.program_id(2)

    # ---- LayerNorm once per row tile; reused by every (n, k) step ----------
    @pl.when(jnp.logical_and(n == 0, k == 0))
    def _():
        x = x_ref[...].astype(jnp.float32)
        f = valid_feats
        mean = jnp.sum(x, axis=-1, keepdims=True) * (1.0 / f)
        diff = (x - mean) * mask_ref[...]            # zero padded lanes for stats
        var_unbiased = jnp.sum(diff * diff, axis=-1, keepdims=True) * (1.0 / (f - 1))
        inv = pl.reciprocal(jnp.sqrt(var_unbiased) + EPS, approx=True)  # EUP slot
        # gamma/beta were folded into W'/b' in the wrapper.
        normed = (diff * inv).astype(ln_ref.dtype)
        for kk in range(num_k):                      # static slices, lane-aligned
            ln_ref[kk] = normed[:, kk * tk:(kk + 1) * tk]
        for nn in range(num_n):                      # residual slices (orig x)
            xres_ref[nn] = x_ref[:, nn * tn:(nn + 1) * tn]

    # ---- Tiled matmul, f32 accumulator (reduction axis k is innermost) -----
    @pl.when(k == 0)
    def _():
        acc_ref[...] = jnp.zeros_like(acc_ref)

    acc_ref[...] += jnp.dot(ln_ref[k], w_ref[...],
                            preferred_element_type=jnp.float32)

    # ---- Finalize: bias + ReLU + dropout(eval => id) + residual add --------
    @pl.when(k == num_k - 1)
    def _():
        h = jnp.maximum(acc_ref[...] + b_ref[...], 0.0)
        o_ref[...] = (xres_ref[n].astype(jnp.float32) + h).astype(o_ref.dtype)


def sublayer_connection(x, gamma, beta, w, b, *, row_tile=512, w_tile=512,
                        matmul_dtype=jnp.bfloat16):
    """x: (rows, features). gamma/beta: (features,). w: (F, F). b: (F,)."""
    rows, feats = x.shape
    assert feats > 1, "unbiased std needs at least 2 features"

    # Lane-dense feature dim (multiple of 128); zero padding masked in-kernel.
    fp = _round_up(feats, 128)
    pad_f = fp - feats
    if pad_f:
        x = jnp.pad(x, ((0, 0), (0, pad_f)))
        gamma = jnp.pad(gamma, (0, pad_f))
        beta = jnp.pad(beta, (0, pad_f))
        b = jnp.pad(b, (0, pad_f))
        w = jnp.pad(w, ((0, pad_f), (0, pad_f)))

    # Fold the LayerNorm affine into the linear layer (one-time, wrapper side):
    #   LN(x) @ W + b == ((x-mean)/(std+eps)) @ (gamma[:,None]*W) + (beta@W + b)
    w_f32 = w.astype(jnp.float32)
    w_folded = (gamma.astype(jnp.float32)[:, None] * w_f32).astype(matmul_dtype)
    b_folded = (beta.astype(jnp.float32) @ w_f32
                + b.astype(jnp.float32)).reshape(1, fp)
    mask = (jnp.arange(fp) < feats).astype(jnp.float32).reshape(1, fp)

    # W tile sizes (must divide Fp; Fp is always a multiple of 128).
    tn = min(fp, _round_up(w_tile, 128))
    while fp % tn:
        tn -= 128
    tk = tn
    num_n = fp // tn
    num_k = fp // tk

    # VMEM budget: respect the actual device VMEM (v7x has only 64 MiB / TC).
    try:
        vmem_cap = int(pltpu.get_tpu_info().vmem_capacity_bytes)
    except Exception:
        vmem_cap = 64 << 20          # conservative fallback (v7x per-TC)
    vmem_budget = int(vmem_cap * 0.8)

    x_itemsize = jnp.dtype(x.dtype).itemsize
    w_itemsize = jnp.dtype(matmul_dtype).itemsize

    def vmem_needed(rt_):
        return (2 * rt_ * fp * x_itemsize        # x row block (double buffered)
                + 2 * rt_ * tn * x_itemsize      # out block (double buffered)
                + 2 * tk * tn * w_itemsize       # W tile (double buffered)
                + 2 * tn * 4 + fp * 4            # bias + mask
                + rt_ * fp * w_itemsize          # layernorm scratch (bf16)
                + rt_ * fp * x_itemsize          # residual scratch
                + rt_ * tn * 4                   # accumulator scratch
                + 4 * rt_ * fp * 4)              # in-kernel f32 temporaries

    # Row tile: as large as the budget allows, >= 2 row steps when possible
    # (v7x megacore shards the 'parallel' row axis across its 2 TensorCores).
    rt = min(_round_up(row_tile, 8), _round_up(rows, 8))
    if rows > 8 and pl.cdiv(rows, rt) < 2:
        rt = max(8, _round_up(pl.cdiv(rows, 2), 8))
    while rt > 8 and vmem_needed(rt) > vmem_budget:
        rt = max(8, _round_up(rt // 2, 8))

    vmem_limit = int(min(max(vmem_needed(rt), 32 << 20), vmem_budget))

    num_i = pl.cdiv(rows, rt)
    grid = (num_i, num_n, num_k)

    cost = pl.CostEstimate(
        flops=2 * rows * fp * fp + 12 * rows * fp,
        transcendentals=2 * rows,
        bytes_accessed=(2 * rows * fp * x_itemsize          # x read + out write
                        + num_i * fp * fp * w_itemsize      # W streamed per row tile
                        + fp * 12),                          # bias + mask
    )

    kernel = functools.partial(_sublayer_connection_kernel,
                               valid_feats=feats, tk=tk, tn=tn,
                               num_k=num_k, num_n=num_n)

    out = pl.pallas_call(
        kernel,
        out_shape=jax.ShapeDtypeStruct((rows, fp), x.dtype),
        grid_spec=pltpu.PrefetchScalarGridSpec(
            num_scalar_prefetch=0,
            grid=grid,
            in_specs=[
                pl.BlockSpec((rt, fp), lambda i, n, k: (i, 0)),     # x row block
                pl.BlockSpec((1, fp), lambda i, n, k: (0, 0),
                             pipeline_mode=pl.Buffered(1)),         # pad mask
                pl.BlockSpec((tk, tn), lambda i, n, k: (k, n)),     # W' tile
                pl.BlockSpec((1, tn), lambda i, n, k: (0, n)),      # folded bias
            ],
            out_specs=pl.BlockSpec((rt, tn), lambda i, n, k: (i, n)),
            scratch_shapes=[
                pltpu.VMEM((num_k, rt, tk), matmul_dtype),  # layernormed activations
                pltpu.VMEM((num_n, rt, tn), x.dtype),       # residual x slices
                pltpu.VMEM((rt, tn), jnp.float32),          # matmul accumulator
            ],
        ),
        compiler_params=pltpu.CompilerParams(
            dimension_semantics=("parallel", "arbitrary", "arbitrary"),
            vmem_limit_bytes=vmem_limit,
        ),
        cost_estimate=cost,
    )(x, mask, w_folded, b_folded)

    return out[:, :feats] if pad_f else out


def _reference(x, gamma, beta, w, b, matmul_dtype=jnp.bfloat16):
    """Pure-JAX reference mirroring the PyTorch forward (eval mode)."""
    mean = jnp.mean(x, axis=-1, keepdims=True)
    std = jnp.std(x, axis=-1, keepdims=True, ddof=1)   # torch.std is unbiased
    normed = gamma * (x - mean) / (std + EPS) + beta
    h = jnp.dot(normed.astype(matmul_dtype), w.astype(matmul_dtype),
                preferred_element_type=jnp.float32)
    h = jnp.maximum(h + b, 0.0)
    return x + h


if __name__ == "__main__":
    key = jax.random.PRNGKey(0)
    batch, seq, size = 2, 8, 32          # SublayerConnection(size=32, dropout=0.1)
    kx, kw, kb = jax.random.split(key, 3)

    x = jax.random.normal(kx, (batch, seq, size), dtype=jnp.float32)

    # LayerNorm params (as in __init__): ones / zeros
    gamma = jnp.ones((size,), dtype=jnp.float32)
    beta = jnp.zeros((size,), dtype=jnp.float32)

    # Deterministic synthetic sublayer: Linear(size, size) + ReLU
    w = jax.random.normal(kw, (size, size), dtype=jnp.float32) * 0.1
    b = jax.random.normal(kb, (size,), dtype=jnp.float32) * 0.1

    x2d = x.reshape(batch * seq, size)
    out = sublayer_connection(x2d, gamma, beta, w, b)
    out = jax.block_until_ready(out)

    ref = _reference(x2d, gamma, beta, w, b)
    assert jnp.allclose(out, ref, atol=2e-2, rtol=2e-2), (
        f"max abs err {jnp.max(jnp.abs(out - ref))}"
    )

    out3d = out.reshape(batch, seq, size)
    assert out3d.shape == x.shape and out3d.dtype == x.dtype
    print("KERNEL_OK")
</pallas_src>

<mosaic_0001>
module attributes {stable_mosaic.version = 11 : i64} {
  func.func @_sublayer_connection_kernel(%arg0: i32, %arg1: i32, %arg2: i32, %arg3: memref<8x128xf32, #tpu.memory_space<vmem>>, %arg4: memref<1x128xf32, #tpu.memory_space<vmem>>, %arg5: memref<128x128xbf16, #tpu.memory_space<vmem>>, %arg6: memref<1x128xf32, #tpu.memory_space<vmem>>, %arg7: memref<8x128xf32, #tpu.memory_space<vmem>>, %arg8: memref<1x8x128xbf16, #tpu.memory_space<vmem>>, %arg9: memref<1x8x128xf32, #tpu.memory_space<vmem>>, %arg10: memref<8x128xf32, #tpu.memory_space<vmem>>) attributes {dimension_semantics = [#tpu.dimension_semantics<parallel>, #tpu.dimension_semantics<arbitrary>, #tpu.dimension_semantics<arbitrary>], iteration_bounds = array<i64: 2, 1, 1>, scalar_prefetch = 0 : i64, scratch_operands = 3 : i64, tpu.core_type = #tpu.core_type<tc>, window_params = [{transform_indices = @transform_0, window_bounds = array<i64: 8, 128>}, {pipeline_mode = #tpu.pipeline_mode<synchronous>, transform_indices = @transform_1, window_bounds = array<i64: 1, 128>}, {transform_indices = @transform_2, window_bounds = array<i64: 128, 128>}, {transform_indices = @transform_3, window_bounds = array<i64: 1, 128>}, {transform_indices = @transform_4, window_bounds = array<i64: 8, 128>}]} {
    %c0_i32 = arith.constant 0 : i32
    %0 = arith.cmpi eq, %arg1, %c0_i32 : i32
    %c0_i32_0 = arith.constant 0 : i32
    %1 = arith.cmpi eq, %arg2, %c0_i32_0 : i32
    %2 = arith.andi %0, %1 : i1
    %3 = arith.extui %2 : i1 to i32
    %c0_i32_1 = arith.constant 0 : i32
    %4 = arith.cmpi ne, %3, %c0_i32_1 : i32
    scf.if %4 {
      %c0_13 = arith.constant 0 : index
      %c0_14 = arith.constant 0 : index
      %19 = vector.load %arg3[%c0_13, %c0_14] : memref<8x128xf32, #tpu.memory_space<vmem>>, vector<8x128xf32>
      %cst_15 = arith.constant dense<0.000000e+00> : vector<8xf32>
      %20 = vector.multi_reduction <add>, %19, %cst_15 [1] : vector<8x128xf32> to vector<8xf32>
      %21 = vector.shape_cast %20 : vector<8xf32> to vector<8x1xf32>
      %cst_16 = arith.constant 3.125000e-02 : f32
      %22 = vector.broadcast %cst_16 : f32 to vector<8x1xf32>
      %23 = arith.mulf %21, %22 : vector<8x1xf32>
      %24 = vector.broadcast %23 : vector<8x1xf32> to vector<8x128xf32>
      %25 = arith.subf %19, %24 : vector<8x128xf32>
      %c0_17 = arith.constant 0 : index
      %c0_18 = arith.constant 0 : index
      %26 = vector.load %arg4[%c0_17, %c0_18] : memref<1x128xf32, #tpu.memory_space<vmem>>, vector<1x128xf32>
      %27 = vector.broadcast %26 : vector<1x128xf32> to vector<8x128xf32>
      %28 = arith.mulf %25, %27 : vector<8x128xf32>
      %29 = arith.mulf %28, %28 : vector<8x128xf32>
      %cst_19 = arith.constant dense<0.000000e+00> : vector<8xf32>
      %30 = vector.multi_reduction <add>, %29, %cst_19 [1] : vector<8x128xf32> to vector<8xf32>
      %31 = vector.shape_cast %30 : vector<8xf32> to vector<8x1xf32>
      %cst_20 = arith.constant 0.0322580636 : f32
      %32 = vector.broadcast %cst_20 : f32 to vector<8x1xf32>
      %33 = arith.mulf %31, %32 : vector<8x1xf32>
      %34 = math.sqrt %33 : vector<8x1xf32>
      %cst_21 = arith.constant 9.99999997E-7 : f32
      %35 = vector.broadcast %cst_21 : f32 to vector<8x1xf32>
      %36 = arith.addf %34, %35 : vector<8x1xf32>
      %37 = tpu.reciprocal %36 {approx = true} : vector<8x1xf32> -> vector<8x1xf32>
      %38 = vector.broadcast %37 : vector<8x1xf32> to vector<8x128xf32>
      %39 = arith.mulf %28, %38 : vector<8x128xf32>
      %40 = arith.truncf %39 : vector<8x128xf32> to vector<8x128xbf16>
      %c0_22 = arith.constant 0 : index
      %c0_23 = arith.constant 0 : index
      %c0_24 = arith.constant 0 : index
      %41 = vector.load %arg8[%c0_22, %c0_23, %c0_24] : memref<1x8x128xbf16, #tpu.memory_space<vmem>>, vector<1x8x128xbf16>
      %42 = vector.shape_cast %41 : vector<1x8x128xbf16> to vector<8x128xbf16>
      %43 = vector.shape_cast %40 : vector<8x128xbf16> to vector<1x8x128xbf16>
      tpu.vector_store %arg8[%c0_22, %c0_23, %c0_24], %43 {strides = array<i32>} : memref<1x8x128xbf16, #tpu.memory_space<vmem>>, vector<1x8x128xbf16>,
      %c0_25 = arith.constant 0 : index
      %c0_26 = arith.constant 0 : index
      %44 = vector.load %arg3[%c0_25, %c0_26] : memref<8x128xf32, #tpu.memory_space<vmem>>, vector<8x128xf32>
      %c0_27 = arith.constant 0 : index
      %c0_28 = arith.constant 0 : index
      %c0_29 = arith.constant 0 : index
      %45 = vector.load %arg9[%c0_27, %c0_28, %c0_29] : memref<1x8x128xf32, #tpu.memory_space<vmem>>, vector<1x8x128xf32>
      %46 = vector.shape_cast %45 : vector<1x8x128xf32> to vector<8x128xf32>
      %47 = vector.shape_cast %44 : vector<8x128xf32> to vector<1x8x128xf32>
      tpu.vector_store %arg9[%c0_27, %c0_28, %c0_29], %47 {strides = array<i32>} : memref<1x8x128xf32, #tpu.memory_space<vmem>>, vector<1x8x128xf32>,
    } else {
    }
    %c0_i32_2 = arith.constant 0 : i32
    %5 = arith.cmpi eq, %arg2, %c0_i32_2 : i32
    %6 = arith.extui %5 : i1 to i32
    %c0_i32_3 = arith.constant 0 : i32
    %7 = arith.cmpi ne, %6, %c0_i32_3 : i32
    scf.if %7 {
      %cst_13 = arith.constant 0.000000e+00 : f32
      %19 = vector.broadcast %cst_13 : f32 to vector<8x128xf32>
      %c0_14 = arith.constant 0 : index
      %c0_15 = arith.constant 0 : index
      %20 = vector.load %arg10[%c0_14, %c0_15] : memref<8x128xf32, #tpu.memory_space<vmem>>, vector<8x128xf32>
      tpu.vector_store %arg10[%c0_14, %c0_15], %19 {strides = array<i32>} : memref<8x128xf32, #tpu.memory_space<vmem>>, vector<8x128xf32>,
    } else {
    }
    %c0 = arith.constant 0 : index
    %c0_4 = arith.constant 0 : index
    %8 = vector.load %arg10[%c0, %c0_4] : memref<8x128xf32, #tpu.memory_space<vmem>>, vector<8x128xf32>
    %9 = arith.index_cast %arg2 : i32 to index
    %c0_5 = arith.constant 0 : index
    %c0_6 = arith.constant 0 : index
    %10 = vector.load %arg8[%9, %c0_5, %c0_6] : memref<1x8x128xbf16, #tpu.memory_space<vmem>>, vector<1x8x128xbf16>
    %11 = vector.shape_cast %10 : vector<1x8x128xbf16> to vector<8x128xbf16>
    %c0_7 = arith.constant 0 : index
    %c0_8 = arith.constant 0 : index
    %12 = vector.load %arg5[%c0_7, %c0_8] : memref<128x128xbf16, #tpu.memory_space<vmem>>, vector<128x128xbf16>
    %cst = arith.constant dense<0.000000e+00> : vector<8x128xf32>
    %13 = tpu.matmul %11, %12, %cst {dimension_numbers = #tpu.dot_dimension_numbers<[1], [0], [0], [1], [0, 0, 1, 1], [], []>} : vector<8x128xbf16>, vector<128x128xbf16>, vector<8x128xf32> -> vector<8x128xf32>
    %14 = arith.addf %8, %13 : vector<8x128xf32>
    %c0_9 = arith.constant 0 : index
    %c0_10 = arith.constant 0 : index
    %15 = vector.load %arg10[%c0_9, %c0_10] : memref<8x128xf32, #tpu.memory_space<vmem>>, vector<8x128xf32>
    tpu.vector_store %arg10[%c0_9, %c0_10], %14 {strides = array<i32>} : memref<8x128xf32, #tpu.memory_space<vmem>>, vector<8x128xf32>,
    %c0_i32_11 = arith.constant 0 : i32
    %16 = arith.cmpi eq, %arg2, %c0_i32_11 : i32
    %17 = arith.extui %16 : i1 to i32
    %c0_i32_12 = arith.constant 0 : i32
    %18 = arith.cmpi ne, %17, %c0_i32_12 : i32
    scf.if %18 {
      %c0_13 = arith.constant 0 : index
      %c0_14 = arith.constant 0 : index
      %19 = vector.load %arg10[%c0_13, %c0_14] : memref<8x128xf32, #tpu.memory_space<vmem>>, vector<8x128xf32>
      %c0_15 = arith.constant 0 : index
      %c0_16 = arith.constant 0 : index
      %20 = vector.load %arg6[%c0_15, %c0_16] : memref<1x128xf32, #tpu.memory_space<vmem>>, vector<1x128xf32>
      %21 = vector.broadcast %20 : vector<1x128xf32> to vector<8x128xf32>
      %22 = arith.addf %19, %21 : vector<8x128xf32>
      %cst_17 = arith.constant 0.000000e+00 : f32
      %23 = vector.broadcast %cst_17 : f32 to vector<8x128xf32>
      %24 = arith.maximumf %22, %23 : vector<8x128xf32>
      %25 = arith.index_cast %arg1 : i32 to index
      %c0_18 = arith.constant 0 : index
      %c0_19 = arith.constant 0 : index
      %26 = vector.load %arg9[%25, %c0_18, %c0_19] : memref<1x8x128xf32, #tpu.memory_space<vmem>>, vector<1x8x128xf32>
      %27 = vector.shape_cast %26 : vector<1x8x128xf32> to vector<8x128xf32>
      %28 = arith.addf %27, %24 : vector<8x128xf32>
      %c0_20 = arith.constant 0 : index
      %c0_21 = arith.constant 0 : index
      %29 = vector.load %arg7[%c0_20, %c0_21] : memref<8x128xf32, #tpu.memory_space<vmem>>, vector<8x128xf32>
      tpu.vector_store %arg7[%c0_20, %c0_21], %28 {strides = array<i32>} : memref<8x128xf32, #tpu.memory_space<vmem>>, vector<8x128xf32>,
    } else {
    }
    return
  }
  func.func @transform_0(%arg0: i32, %arg1: i32, %arg2: i32) -> (i32, i32) {
    %c0_i32 = arith.constant 0 : i32
    %c0_i32_0 = arith.constant 0 : i32
    return %arg0, %c0_i32 : i32, i32
  }
  func.func @transform_1(%arg0: i32, %arg1: i32, %arg2: i32) -> (i32, i32) {
    %c0_i32 = arith.constant 0 : i32
    %c0_i32_0 = arith.constant 0 : i32
    %c0_i32_1 = arith.constant 0 : i32
    return %c0_i32, %c0_i32_0 : i32, i32
  }
  func.func @transform_2(%arg0: i32, %arg1: i32, %arg2: i32) -> (i32, i32) {
    %c0_i32 = arith.constant 0 : i32
    return %arg2, %arg1 : i32, i32
  }
  func.func @transform_3(%arg0: i32, %arg1: i32, %arg2: i32) -> (i32, i32) {
    %c0_i32 = arith.constant 0 : i32
    %c0_i32_0 = arith.constant 0 : i32
    return %c0_i32, %arg1 : i32, i32
  }
  func.func @transform_4(%arg0: i32, %arg1: i32, %arg2: i32) -> (i32, i32) {
    %c0_i32 = arith.constant 0 : i32
    return %arg0, %arg1 : i32, i32
  }
}

</mosaic_0001>

<llo_original>
// kernel: tpu_custom_call.1
$region0: #{tpu_custom_call.1}
  #allocation0 [shape = 'u32[]', space=smem, size = 0x4, offset = 0x4, fixed_abs, tag = 'smem constant byte address 0x4 - core index']
  #allocation1 [shape = 'u32[144,128]{1,0:T(1,128)}', space=vmem, size = 0x12000, scoped, tag = 'internal scratch']
  #allocation2 [shape = 'bf16[1,8,128]{2,1,0:T(8,128)(2,1)}', space=vmem, size = 0x800, scoped, tag = 'scratch operand']
  #allocation3 [shape = 'f32[1,8,128]{2,1,0:T(8,128)}', space=vmem, size = 0x1000, scoped, tag = 'scratch operand']
  #allocation4 [shape = 'f32[8,128]{1,0:T(8,128)}', space=vmem, size = 0x1000, scoped, tag = 'scratch operand']
  %s0 = inlined_call_operand.hbm [shape: f32[16,128], index: 0, kind: input, shape index: {}]
  %s1 = inlined_call_operand.vmem [shape: f32[1,128], index: 1, kind: input, shape index: {}]
  %s2 = inlined_call_operand.hbm [shape: bf16[128,128], index: 2, kind: input, shape index: {}]
  %s3 = inlined_call_operand.vmem [shape: f32[1,128], index: 3, kind: input, shape index: {}]
  %s4 = inlined_call_operand.hbm [shape: f32[16,128], index: 4, kind: output, shape index: {}]
  %s5 = sld [smem:[#allocation0]]
  $region69: #{tpu_custom_call.1} parent=0
    _
  %s7 = ssub.s32 1, %s5
  %s8 = scalar_select 0, %s7, %s5
  $region1: #{tpu_custom_call.1} parent=0
    #allocation5 [shape = 'u8[8192]{0}', space=vmem, size = 0x2000, scoped, tag = 'input window, operand 0']
    #allocation6 [shape = 's32[2]{0}', space=sflag, size = 0x8, scoped, tag = 'scoped memory for tpu_custom_call.1']
    #allocation7 [shape = 's32[2]{0}', space=sflag, size = 0x8, scoped, tag = 'scoped memory for tpu_custom_call.1']
    #allocation8 [shape = 'u8[32768]{0}', space=vmem, size = 0x8000, scoped, tag = 'input window, operand 2, single buffered']
    #allocation9 [shape = 's32[1]{0}', space=sflag, size = 0x4, scoped, tag = 'scoped memory for tpu_custom_call.1']
    #allocation10 [shape = 'u8[8192]{0}', space=vmem, size = 0x2000, scoped, tag = 'output window, operand 0']
    %9 = vsyncpa [#allocation6], 0
    %s10 = scalar_lea.sflag [#allocation6], 1
    %11 = vsyncpa %s10, 0
    %12 = vsyncpa [#allocation9], 0
    %13 = vsyncpa [#allocation7], 0
    %s14 = scalar_lea.sflag [#allocation7], 1
    %15 = vsyncpa %s14, 0
    loop: start=0, step=1, limit=4
    $region2: #{tpu_custom_call.1} parent=1 // loop_pre_header
      _
    $region3: #{tpu_custom_call.1} parent=1 // loop_header
      %s17 = sphi 0, %s21
      %p18 = scmp.ge.s32.totalorder %s17, 4
      %s24 = sphi 0, %s43
      %s25 = sphi 0, %s39
      %s26 = sphi 0, %s35
      %s27 = sphi 0, %s24
      %s28 = sphi 0, %s25
      %s29 = sphi 0, %s26
      %s30 = sphi 0, %s27
      %s31 = sphi 0, %s28
      %s32 = sphi 0, %s29
      %s46 = sphi 0, %s48
      %s49 = sphi 0, %s46
      %s50 = sphi 0, %s49
      %s66 = sphi 0, %s50
      %s70 = sphi 0, %s70
      %s72 = sphi 0, %s70
      %s73 = sphi 0, %s72
      %s87 = sphi 0, %s73
      %s95 = sphi 0, %s97
      %s98 = sphi 0, %s95
      %s99 = sphi 0, %s98
      %s115 = sphi 0, %s99
      %s121 = sphi 0, %s123
      %s124 = sphi 0, %s121
      %s125 = sphi 0, %s124
      %s141 = sphi 0, %s125
      %s149 = sphi 0, %s151
      %s152 = sphi 0, %s149
      %s153 = sphi 0, %s152
      %s169 = sphi 0, %s153
    $region4: #{tpu_custom_call.1} parent=1 // loop_header_branch
      %20 = sbr.rel (%p18) target = $region8
    $region5: #{tpu_custom_call.1} parent=1 // loop_body
      %s22 = ssub.s32 %s17, 1
      %s23 = ssub.s32 %s17, 2
      %s33 = sadd.s32 1, %s26
      %p34 = scmp.ge.s32.totalorder %s33, 1
      %s35 = scalar_select %p34, 0, %s33
      %s36 = sadd.s32 1, %s25
      %s37 = scalar_select %p34, %s36, %s25
      %p38 = scmp.ge.s32.totalorder %s37, 1
      %s39 = scalar_select %p38, 0, %s37
      %s40 = sadd.s32 1, %s24
      %s41 = scalar_select %p38, %s40, %s24
      %p42 = scmp.ge.s32.totalorder %s41, 2
      %s43 = scalar_select %p42, 0, %s41
      %s44 = ssub.s32 %s24, %s43
      %p45 = scmp.eq.s32.totalorder %s44, 0
      %s47 = sadd.s32 %s46, 1
      %s48 = scalar_select %p45, %s46, %s47
      %p51 = pneg %p45
      %p52 = scmp.eq.s32.totalorder %s17, 1
      %p53 = por %p51, %p52
      %p54 = scmp.ne.s32.totalorder %s46, %s49
      %p55 = scmp.eq.s32.totalorder %s17, 0
      %p56 = por %p54, %p55
      %p57 = scmp.ne.s32.totalorder %s46, %s49
      %p58 = scmp.eq.s32.totalorder %s22, 1
      %p59 = por %p57, %p58
      %p60 = scmp.ne.s32.totalorder %s49, %s50
      %p61 = scmp.eq.s32.totalorder %s22, 0
      %p62 = por %p60, %p61
      %p63 = scmp.ne.s32.totalorder %s49, %s50
      %p64 = scmp.eq.s32.totalorder %s23, 1
      %p65 = por %p63, %p64
      %p67 = scmp.ne.s32.totalorder %s50, %s66
      %p68 = scmp.eq.s32.totalorder %s23, 0
      %p69 = por %p67, %p68
      %s71 = sadd.s32 %s70, 1
      %p74 = scmp.eq.s32.totalorder %s17, 1
      %p75 = scmp.ne.s32.totalorder %s70, %s72
      %p76 = scmp.eq.s32.totalorder %s17, 0
      %p77 = por %p75, %p76
      %p78 = scmp.ne.s32.totalorder %s70, %s72
      %p79 = scmp.eq.s32.totalorder %s22, 1
      %p80 = por %p78, %p79
      %p81 = scmp.ne.s32.totalorder %s72, %s73
      %p82 = scmp.eq.s32.totalorder %s22, 0
      %p83 = por %p81, %p82
      %p84 = scmp.ne.s32.totalorder %s72, %s73
      %p85 = scmp.eq.s32.totalorder %s23, 1
      %p86 = por %p84, %p85
      %p88 = scmp.ne.s32.totalorder %s73, %s87
      %p89 = scmp.eq.s32.totalorder %s23, 0
      %p90 = por %p88, %p89
      %s91 = ssub.s32 %s26, %s35
      %s92 = ssub.s32 %s25, %s39
      %s93 = sor.u32 %s91, %s92
      %p94 = scmp.eq.s32.totalorder %s93, 0
      %s96 = sadd.s32 %s95, 1
      %s97 = scalar_select %p94, %s95, %s96
      %p100 = pneg %p94
      %p101 = scmp.eq.s32.totalorder %s17, 1
      %p102 = por %p100, %p101
      %p103 = scmp.ne.s32.totalorder %s95, %s98
      %p104 = scmp.eq.s32.totalorder %s17, 0
      %p105 = por %p103, %p104
      %p106 = scmp.ne.s32.totalorder %s95, %s98
      %p107 = scmp.eq.s32.totalorder %s22, 1
      %p108 = por %p106, %p107
      %p109 = scmp.ne.s32.totalorder %s98, %s99
      %p110 = scmp.eq.s32.totalorder %s22, 0
      %p111 = por %p109, %p110
      %p112 = scmp.ne.s32.totalorder %s98, %s99
      %p113 = scmp.eq.s32.totalorder %s23, 1
      %p114 = por %p112, %p113
      %p116 = scmp.ne.s32.totalorder %s99, %s115
      %p117 = scmp.eq.s32.totalorder %s23, 0
      %p118 = por %p116, %p117
      %s119 = ssub.s32 %s25, %s39
      %p120 = scmp.eq.s32.totalorder %s119, 0
      %s122 = sadd.s32 %s121, 1
      %s123 = scalar_select %p120, %s121, %s122
      %p126 = pneg %p120
      %p127 = scmp.eq.s32.totalorder %s17, 1
      %p128 = por %p126, %p127
      %p129 = scmp.ne.s32.totalorder %s121, %s124
      %p130 = scmp.eq.s32.totalorder %s17, 0
      %p131 = por %p129, %p130
      %p132 = scmp.ne.s32.totalorder %s121, %s124
      %p133 = scmp.eq.s32.totalorder %s22, 1
      %p134 = por %p132, %p133
      %p135 = scmp.ne.s32.totalorder %s124, %s125
      %p136 = scmp.eq.s32.totalorder %s22, 0
      %p137 = por %p135, %p136
      %p138 = scmp.ne.s32.totalorder %s124, %s125
      %p139 = scmp.eq.s32.totalorder %s23, 1
      %p140 = por %p138, %p139
      %p142 = scmp.ne.s32.totalorder %s125, %s141
      %p143 = scmp.eq.s32.totalorder %s23, 0
      %p144 = por %p142, %p143
      %s145 = ssub.s32 %s24, %s43
      %s146 = ssub.s32 %s25, %s39
      %s147 = sor.u32 %s145, %s146
      %p148 = scmp.eq.s32.totalorder %s147, 0
      %s150 = sadd.s32 %s149, 1
      %s151 = scalar_select %p148, %s149, %s150
      %p154 = pneg %p148
      %p155 = scmp.eq.s32.totalorder %s17, 1
      %p156 = por %p154, %p155
      %p157 = scmp.ne.s32.totalorder %s149, %s152
      %p158 = scmp.eq.s32.totalorder %s17, 0
      %p159 = por %p157, %p158
      %p160 = scmp.ne.s32.totalorder %s149, %s152
      %p161 = scmp.eq.s32.totalorder %s22, 1
      %p162 = por %p160, %p161
      %p163 = scmp.ne.s32.totalorder %s152, %s153
      %p164 = scmp.eq.s32.totalorder %s22, 0
      %p165 = por %p163, %p164
      %p166 = scmp.ne.s32.totalorder %s152, %s153
      %p167 = scmp.eq.s32.totalorder %s23, 1
      %p168 = por %p166, %p167
      %p170 = scmp.ne.s32.totalorder %s153, %s169
      %p171 = scmp.eq.s32.totalorder %s23, 0
      %p172 = por %p170, %p171
      %p173 = scmp.le.s32.totalorder 1, %s17
      %p174 = scmp.lt.s32.totalorder %s17, 3
      %p175 = pnand %p173, %p174
      %p176 = pneg %p175
      // Predicated region
      $region9: #{tpu_custom_call.1} parent=5 // pred_check
        _
      $region10: #{tpu_custom_call.1} parent=5 // pred_check_branch
        %178 = sbr.rel (%p175) target = $region12
      $region11: #{tpu_custom_call.1} parent=5 // pred_region
        %s179 = ssub.s32 %s17, 1
        // Predicated region
        $region13: #{tpu_custom_call.1} parent=11 // pred_check
          %p180 = pneg %p83
        $region14: #{tpu_custom_call.1} parent=11 // pred_check_branch
          %182 = sbr.rel (%p180) target = $region16
        $region15: #{tpu_custom_call.1} parent=11 // pred_region
          _
        $region16: #{tpu_custom_call.1} parent=11 // pred_fallthru
          _
        // Predicated region
        $region17: #{tpu_custom_call.1} parent=11 // pred_check
          %p183 = pneg %p111
        $region18: #{tpu_custom_call.1} parent=11 // pred_check_branch
          %185 = sbr.rel (%p183) target = $region20
        $region19: #{tpu_custom_call.1} parent=11 // pred_region
          %s186 = smul.u32 16, %s29
          %s188 = ssub.s32 1024, 1024
          %189 = vsyncadd [#allocation9], %s188
          %s190 = sadd.s32 %s28, %s186
          %s191 = smul.addr %s190, 64
          %s192 = scalar_lea.hbm %s2, %s191
          %s193 = sshll.u32 [#allocation8], 4
          %s194 = int_to_ptr.vmem [resolvable:$true] %s193
          %199 = dma.hbm_to_vmem [thread:$0]  %s192, 1024, %s194, [#allocation9], 64, 64, 4
        $region20: #{tpu_custom_call.1} parent=11 // pred_fallthru
          _
        // Predicated region
        $region21: #{tpu_custom_call.1} parent=11 // pred_check
          %p200 = pneg %p137
        $region22: #{tpu_custom_call.1} parent=11 // pred_check_branch
          %202 = sbr.rel (%p200) target = $region24
        $region23: #{tpu_custom_call.1} parent=11 // pred_region
          %p203 = scmp.lt.s32.totalorder %s28, 0
          %s204 = scalar_select %p203, %s28, 0
          %s205 = scalar_lea.vmem %s3, %s204
        $region24: #{tpu_custom_call.1} parent=11 // pred_fallthru
          _
      $region12: #{tpu_custom_call.1} parent=5 // pred_fallthru
        _
      %p206 = scmp.lt.s32.totalorder %s17, 2
      // Predicated region
      $region25: #{tpu_custom_call.1} parent=5 // pred_check
        %p207 = pneg %p206
      $region26: #{tpu_custom_call.1} parent=5 // pred_check_branch
        %209 = sbr.rel (%p207) target = $region28
      $region27: #{tpu_custom_call.1} parent=5 // pred_region
        // Predicated region
        $region29: #{tpu_custom_call.1} parent=27 // pred_check
          %p210 = pneg %p56
        $region30: #{tpu_custom_call.1} parent=27 // pred_check_branch
          %212 = sbr.rel (%p210) target = $region32
        $region31: #{tpu_custom_call.1} parent=27 // pred_region
          %s213 = sand.u32 %s46, 1
          %s214 = scalar_lea.sflag [#allocation6], %s213
          %s215 = sand.u32 %s46, 1
          %s216 = smul.addr %s215, 8
          %s217 = scalar_lea.vmem [#allocation5], %s216
          %s219 = ssub.s32 128, 128
          %220 = vsyncadd %s214, %s219
          %s221 = smul.addr %s24, 128
          %s222 = scalar_lea.hbm %s0, %s221
          %s224 = sshll.u32 %s217, 4
          %s225 = int_to_ptr.vmem [resolvable:$true] %s224
          %227 = dma.hbm_to_vmem [thread:$0]  %s222, 128, %s225, %s214
        $region32: #{tpu_custom_call.1} parent=27 // pred_fallthru
          _
      $region28: #{tpu_custom_call.1} parent=5 // pred_fallthru
        _
      %p228 = scmp.le.s32.totalorder 1, %s17
      %p229 = scmp.lt.s32.totalorder %s17, 3
      %p230 = pnand %p228, %p229
      %p231 = pneg %p230
      // Predicated region
      $region33: #{tpu_custom_call.1} parent=5 // pred_check
        _
      $region34: #{tpu_custom_call.1} parent=5 // pred_check_branch
        %233 = sbr.rel (%p230) target = $region36
      $region35: #{tpu_custom_call.1} parent=5 // pred_region
        %s234 = ssub.s32 %s17, 1
        %s235 = sand.u32 %s49, 1
        %s236 = scalar_lea.sflag [#allocation6], %s235
        %s237 = sand.u32 %s49, 1
        %s238 = smul.addr %s237, 8
        %s239 = scalar_lea.vmem [#allocation5], %s238
        // Predicated region
        $region37: #{tpu_custom_call.1} parent=35 // pred_check
          %p240 = pneg %p62
        $region38: #{tpu_custom_call.1} parent=35 // pred_check_branch
          %242 = sbr.rel (%p240) target = $region40
        $region39: #{tpu_custom_call.1} parent=35 // pred_region
          %243 = dma.done %s236, 128
        $region40: #{tpu_custom_call.1} parent=35 // pred_fallthru
          _
        // Predicated region
        $region41: #{tpu_custom_call.1} parent=35 // pred_check
          %p244 = pneg %p111
        $region42: #{tpu_custom_call.1} parent=35 // pred_check_branch
          %246 = sbr.rel (%p244) target = $region44
        $region43: #{tpu_custom_call.1} parent=35 // pred_region
          %247 = dma.done [#allocation9], 1024
        $region44: #{tpu_custom_call.1} parent=35 // pred_fallthru
          _
        %s248 = sand.u32 %s49, 1
        %s249 = scalar_lea.sflag [#allocation6], %s248
        %s250 = sand.u32 %s49, 1
        %s251 = smul.addr %s250, 8
        %s252 = scalar_lea.vmem [#allocation5], %s251
        %p253 = pneg %p62
        %p254 = pneg %p59
        %p255 = pneg %p83
        %p256 = pneg %p80
        %p257 = pneg %p111
        %p258 = pneg %p108
        %p259 = scmp.lt.s32.totalorder %s28, 0
        %s260 = scalar_select %p259, %s28, 0
        %s261 = scalar_lea.vmem %s3, %s260
        %p262 = pneg %p137
        %p263 = pneg %p134
        %p264 = pneg %p165
        %p265 = pneg %p162
        %s266 = sand.u32 %s152, 1
        %s267 = scalar_lea.sflag [#allocation7], %s266
        %s268 = sand.u32 %s152, 1
        %s269 = smul.addr %s268, 8
        %s270 = scalar_lea.vmem [#allocation10], %s269
        %s271 = smul.u32 16, %s29
        %p272 = scmp.lt.s32.totalorder %s28, 0
        %s273 = scalar_select %p272, %s28, 0
        %s274 = scalar_lea.vmem %s3, %s273
        %p276 = scmp.eq.s32.totalorder %s28, 0
        %p277 = scmp.eq.s32.totalorder %s29, 0
        %p278 = pnand %p276, %p277
        %p279 = pneg %p278
        // Predicated region
        $region45: #{tpu_custom_call.1} parent=35 // pred_check
          _
        $region46: #{tpu_custom_call.1} parent=35 // pred_check_branch
          %281 = sbr.rel (%p278) target = $region48
        $region47: #{tpu_custom_call.1} parent=35 // pred_region
          %v282 = vld [vmem:[%s239] sm:$0xff]
          %283 = vadd.xlane.f32.xlu0 %v282
          %v284 = vpop.xlane.xlu0 %283
          %v285 = vmul.f32 %v284, 0.03125
          %v286 = vsub.f32 %v282, %v285
          %v287 = vld [vmem:[%s1] sm:$0x1]
          %v289 = vlaneseq
          %v290 = vshrl.u32 %v289, 7
          %v291 = vsub.s32 0, %v290
          %v292 = vrot.slane %v287, %v291
          %v294 = vmul.f32 %v286, %v292
          %v295 = vmul.f32 %v294, %v294
          %296 = vadd.xlane.f32.xlu0 %v295
          %v297 = vpop.xlane.xlu0 %296
          %v298 = vmul.f32 %v297, 0.032258064
          %v299 = vrsqrt.pop %v298
          %v300 = vmul.f32 %v298, %v299
          %vm301 = vcmp.eq.f32.partialorder %v298, inf
          %v302 = vsel %vm301, %v298, %v300
          %vm303 = vcmp.eq.f32.partialorder %v298, 0.0
          %v304 = vand.u32 %v298, 2147483648
          %v305 = vsel %vm303, %v304, %v302
          %v306 = vadd.f32 %v305, 1e-06
          %v307 = vrcp.pop %v306
          %v308 = vmul.f32 %v294, %v307
          %v309 = vpack.c.bf16 %v308, %v308
          %310 = vst [vmem:[#allocation2] sm:$0xf] %v309
          %v311 = vld [vmem:[%s239] sm:$0xff]
          %312 = vst [vmem:[#allocation3] sm:$0xff] %v311
        $region48: #{tpu_custom_call.1} parent=35 // pred_fallthru
          _
        // Predicated region
        $region49: #{tpu_custom_call.1} parent=35 // pred_check
          %p313 = pneg %p277
        $region50: #{tpu_custom_call.1} parent=35 // pred_check_branch
          %315 = sbr.rel (%p313) target = $region52
        $region51: #{tpu_custom_call.1} parent=35 // pred_region
          %316 = vst [vmem:[#allocation4] sm:$0xff] 0.0
        $region52: #{tpu_custom_call.1} parent=35 // pred_fallthru
          _
        %v317 = vld [vmem:[#allocation4] sm:$0xff]
        %s318 = smul.addr %s29, 4
        %s319 = scalar_lea.vmem [#allocation2], %s318
        %v320 = vld [vmem:[%s319] sm:$0xf]
        %v321 = vld [vmem:[#allocation8] sm:$0xf]
        %v322 = vld [vmem:[#allocation8 + $0x4] sm:$0xf]
        %v323 = vld [vmem:[#allocation8 + $0x8] sm:$0xf]
        %v324 = vld [vmem:[#allocation8 + $0xc] sm:$0xf]
        %v325 = vld [vmem:[#allocation8 + $0x10] sm:$0xf]
        %v326 = vld [vmem:[#allocation8 + $0x14] sm:$0xf]
        %v327 = vld [vmem:[#allocation8 + $0x18] sm:$0xf]
        %v328 = vld [vmem:[#allocation8 + $0x1c] sm:$0xf]
        %v329 = vld [vmem:[#allocation8 + $0x20] sm:$0xf]
        %v330 = vld [vmem:[#allocation8 + $0x24] sm:$0xf]
        %v331 = vld [vmem:[#allocation8 + $0x28] sm:$0xf]
        %v332 = vld [vmem:[#allocation8 + $0x2c] sm:$0xf]
        %v333 = vld [vmem:[#allocation8 + $0x30] sm:$0xf]
        %v334 = vld [vmem:[#allocation8 + $0x34] sm:$0xf]
        %v335 = vld [vmem:[#allocation8 + $0x38] sm:$0xf]
        %v336 = vld [vmem:[#allocation8 + $0x3c] sm:$0xf]
        %v353 = vunpack.c.l.b16 %v321
        %v354 = vunpack.c.l.b16 %v322
        %v355 = vunpack.c.l.b16 %v323
        %v356 = vunpack.c.l.b16 %v324
        %v357 = vunpack.c.l.b16 %v325
        %v358 = vunpack.c.l.b16 %v326
        %v359 = vunpack.c.l.b16 %v327
        %v360 = vunpack.c.l.b16 %v328
        %v361 = vunpack.c.l.b16 %v329
        %v362 = vunpack.c.l.b16 %v330
        %v363 = vunpack.c.l.b16 %v331
        %v364 = vunpack.c.l.b16 %v332
        %v365 = vunpack.c.l.b16 %v333
        %v366 = vunpack.c.l.b16 %v334
        %v367 = vunpack.c.l.b16 %v335
        %v368 = vunpack.c.l.b16 %v336
        %v369 = vpack.c.b16 %v354, %v353
        %v370 = vpack.c.b16 %v356, %v355
        %v371 = vpack.c.b16 %v358, %v357
        %v372 = vpack.c.b16 %v360, %v359
        %v373 = vpack.c.b16 %v362, %v361
        %v374 = vpack.c.b16 %v364, %v363
        %v375 = vpack.c.b16 %v366, %v365
        %v376 = vpack.c.b16 %v368, %v367
        %385 = vmatprep.subr.bf16.mxu0 0
        %386 = vmatpush1.bf16.msra.mxu0 %v369
        %387 = vmatprep.subr.bf16.mxu0 0
        %388 = vmatpush1.bf16.msra.mxu0 %v370
        %389 = vmatprep.subr.bf16.mxu0 0
        %390 = vmatpush1.bf16.msra.mxu0 %v371
        %391 = vmatprep.subr.bf16.mxu0 0
        %392 = vmatpush1.bf16.msra.mxu0 %v372
        %393 = vmatprep.subr.bf16.mxu0 0
        %394 = vmatpush1.bf16.msra.mxu0 %v373
        %395 = vmatprep.subr.bf16.mxu0 0
        %396 = vmatpush1.bf16.msra.mxu0 %v374
        %397 = vmatprep.subr.bf16.mxu0 0
        %398 = vmatpush1.bf16.msra.mxu0 %v375
        %399 = vmatprep.subr.bf16.mxu0 0
        %400 = vmatpush1.bf16.msra.mxu0 %v376
        %401 = vmatprep.subr.bf16.mxu0 0
        %402 = vmatpush1.bf16.msra.mxu0 0
        %403 = vmatprep.subr.bf16.mxu0 0
        %404 = vmatpush1.bf16.msra.mxu0 0
        %405 = vmatprep.subr.bf16.mxu0 0
        %406 = vmatpush1.bf16.msra.mxu0 0
        %407 = vmatprep.subr.bf16.mxu0 0
        %408 = vmatpush1.bf16.msra.mxu0 0
        %409 = vmatprep.subr.bf16.mxu0 0
        %410 = vmatpush1.bf16.msra.mxu0 0
        %411 = vmatprep.subr.bf16.mxu0 0
        %412 = vmatpush1.bf16.msra.mxu0 0
        %413 = vmatprep.subr.bf16.mxu0 0
        %414 = vmatpush1.bf16.msra.mxu0 0
        %415 = vmatprep.subr.bf16.mxu0 0
        %416 = vmatpush1.bf16.msra.mxu0 0
        %417 = vmatprep.mubr.bf16.mxu0 0
        %418 = vmatmul.mubr.bf16.gmra.mrb[0].mxu0 %v320
        %v419 = vpop.f32.mrb[0].mxu0
        %v420 = vadd.f32 0.0, %v419
        %v421 = vpop.f32.mrb[0].mxu0
        %v422 = vpop.f32.mrb[0].mxu0
        %v423 = vpop.f32.mrb[0].mxu0
        %424 = vdwg.mxu0
        %v425 = vadd.f32 %v317, %v420
        %426 = vst [vmem:[#allocation4] sm:$0xff] %v425
        // Predicated region
        $region53: #{tpu_custom_call.1} parent=35 // pred_check
          %p427 = pneg %p277
        $region54: #{tpu_custom_call.1} parent=35 // pred_check_branch
          %429 = sbr.rel (%p427) target = $region56
        $region55: #{tpu_custom_call.1} parent=35 // pred_region
          %v430 = vld [vmem:[#allocation4] sm:$0xff]
          %v431 = vld [vmem:[%s274] sm:$0x1]
          %v433 = vlaneseq
          %v434 = vshrl.u32 %v433, 7
          %v435 = vsub.s32 0, %v434
          %v436 = vrot.slane %v431, %v435
          %v438 = vadd.f32 %v430, %v436
          %v439 = vmax.f32 %v438, 0.0
          %s440 = smul.u32 %s28, 8
          %s441 = scalar_lea.vmem [#allocation3], %s440
          %v442 = vld [vmem:[%s441] sm:$0xff]
          %v443 = vadd.f32 %v442, %v439
          %444 = vst [vmem:[%s270] sm:$0xff] %v443
        $region56: #{tpu_custom_call.1} parent=35 // pred_fallthru
          _
        %s445 = sand.u32 %s152, 1
        %s446 = scalar_lea.sflag [#allocation7], %s445
        %s447 = sand.u32 %s152, 1
        %s448 = smul.addr %s447, 8
        %s449 = scalar_lea.vmem [#allocation10], %s448
        // Predicated region
        $region57: #{tpu_custom_call.1} parent=35 // pred_check
          %p450 = pneg %p162
        $region58: #{tpu_custom_call.1} parent=35 // pred_check_branch
          %452 = sbr.rel (%p450) target = $region60
        $region59: #{tpu_custom_call.1} parent=35 // pred_region
          %s454 = ssub.s32 128, 128
          %455 = vsyncadd %s446, %s454
          %s456 = sadd.s32 %s28, %s27
          %s457 = smul.addr %s456, 128
          %s458 = scalar_lea.hbm %s4, %s457
          %s460 = sshll.u32 %s449, 4
          %s461 = int_to_ptr.vmem [resolvable:$true] %s460
          %463 = dma.vmem_to_hbm [thread:$0]  %s461, 128, %s458, %s446
        $region60: #{tpu_custom_call.1} parent=35 // pred_fallthru
          _
      $region36: #{tpu_custom_call.1} parent=5 // pred_fallthru
        _
      %p464 = scmp.le.s32.totalorder 2, %s17
      // Predicated region
      $region61: #{tpu_custom_call.1} parent=5 // pred_check
        %p465 = pneg %p464
      $region62: #{tpu_custom_call.1} parent=5 // pred_check_branch
        %467 = sbr.rel (%p465) target = $region64
      $region63: #{tpu_custom_call.1} parent=5 // pred_region
        %s468 = ssub.s32 %s17, 2
        // Predicated region
        $region65: #{tpu_custom_call.1} parent=63 // pred_check
          %p469 = pneg %p168
        $region66: #{tpu_custom_call.1} parent=63 // pred_check_branch
          %471 = sbr.rel (%p469) target = $region68
        $region67: #{tpu_custom_call.1} parent=63 // pred_region
          %s472 = sand.u32 %s153, 1
          %s473 = scalar_lea.sflag [#allocation7], %s472
          %s474 = sand.u32 %s153, 1
          %s475 = smul.addr %s474, 8
          %s476 = scalar_lea.vmem [#allocation10], %s475
          %477 = dma.done %s473, 128
        $region68: #{tpu_custom_call.1} parent=63 // pred_fallthru
          _
      $region64: #{tpu_custom_call.1} parent=5 // pred_fallthru
        _
    $region6: #{tpu_custom_call.1} parent=1 // loop_footer
      %s21 = sadd.s32 1, %s17
    $region7: #{tpu_custom_call.1} parent=1 // loop_footer_branch
      %16 = sbr.rel target = $region3
    $region8: #{tpu_custom_call.1} parent=1 // loop_exit
      _
    %478 = vsyncpa [#allocation6], 1
    %s479 = scalar_lea.sflag [#allocation6], 1
    %480 = vsyncpa %s479, 1
    %481 = vsyncpa [#allocation9], 1
    %482 = vsyncpa [#allocation7], 1
    %s483 = scalar_lea.sflag [#allocation7], 1
    %484 = vsyncpa %s483, 1

</llo_original>
